<compile_context>
chip_gen: v7x
topology: tpu7x:2x2x1
jax: 0.10.0
libtpu: 0.0.40
codegen_flags: <defaults>
</compile_context>

<pallas_src>
import functools

import jax
import jax.numpy as jnp
from jax import lax
from jax.experimental import pallas as pl
from jax.experimental.pallas import tpu as pltpu


def _round_up(x, m):
    return ((x + m - 1) // m) * m


def _pick_block_rows(batch, num_assets, requested=None,
                     target_block_bytes=2 << 20):
    """Time-tile height: a multiple of 8 sublanes sized so one (tb, N) f32
    block is ~2 MiB.  With 2 inputs x 2 pipeline buffers that is ~8 MiB VMEM,
    well inside the default scoped limit on v5e/v6e and v7x's 64 MiB."""
    if requested is None:
        rows = target_block_bytes // max(1, num_assets * 4)
        requested = max(8, min(2048, int(rows)))
    tb = min(int(requested), _round_up(batch, 8))
    tb = max(8, (tb // 8) * 8)
    return tb


def _sharp_loss_kernel(w_ref, p_ref, o_ref,
                       carry_ref, slog_ref, sr_ref, sr2_ref, *, batch):
    """One (tb, N) time tile; carried reduction across the grid."""
    g = pl.program_id(0)
    tb = w_ref.shape[0]  # static tile height (multiple of 8)

    @pl.when(g == 0)
    def _init():
        carry_ref[...] = jnp.ones_like(carry_ref)   # benign; row 0 is masked
        slog_ref[...] = jnp.zeros_like(slog_ref)
        sr_ref[...] = jnp.zeros_like(sr_ref)
        sr2_ref[...] = jnp.zeros_like(sr2_ref)

    w = w_ref[...].astype(jnp.float32)
    p = p_ref[...].astype(jnp.float32)

    # Portfolio value per time step: row-wise dot product -> (tb, 1).
    v = jnp.sum(w * p, axis=-1, keepdims=True)

    # Previous-step value: sublane rotate (XLU, free slot) + splice the carried
    # last value of the previous tile into row 0.  Everything stays (tb, 1).
    row = lax.broadcasted_iota(jnp.int32, (tb, 1), 0)
    v_shift = pltpu.roll(v, shift=1, axis=0)
    v_prev = jnp.where(row == 0, carry_ref[...], v_shift)

    r = v / (v_prev + 1e-7) - 1.0

    # Rows with global index 0 (no previous step) or >= batch (zero padding of
    # the last tile) contribute nothing to the running sums.
    gidx = g * tb + row
    valid = jnp.logical_and(gidx >= 1, gidx < batch)
    zero = jnp.zeros_like(r)
    r_m = jnp.where(valid, r, zero)
    log_m = jnp.where(valid, jnp.log(1.0 + r), zero)

    # Running reductions (tb/8 vreg adds + one sublane reduce per tile; tiny
    # next to the HBM stream).
    slog_ref[...] += jnp.sum(log_m, keepdims=True)
    sr_ref[...] += jnp.sum(r_m, keepdims=True)
    sr2_ref[...] += jnp.sum(r_m * r_m, keepdims=True)

    # Carry the last value of this tile; only consumed if another tile follows
    # (in which case this tile has no padded rows, so row tb-1 is valid).
    carry_ref[...] = v[tb - 1:tb, :]

    @pl.when(g == pl.num_programs(0) - 1)
    def _finalize():
        n = float(batch - 1)                       # number of returns (static)
        # Annualized mean return, computed in log space (EUP exp).
        ann_mean = jnp.exp((252.0 / n) * slog_ref[...]) - 1.0
        # Unbiased (ddof=1) std via running moments, like torch.std.
        var = (sr2_ref[...] - (sr_ref[...] * sr_ref[...]) / n) / (n - 1.0)
        var = jnp.maximum(var, 0.0)
        ann_std = jnp.sqrt(var) * (252.0 ** 0.5)
        o_ref[...] = -(ann_mean / ann_std)


def sharp_loss(weights, prices, *, block_rows=None):
    """Negative Sharpe ratio of a portfolio value series (Pallas TPU kernel).

    weights, prices: (B, N) arrays (f32 or bf16).  block_rows (time-tile
    height) is auto-sized from N if None; override only for testing/tuning.
    """
    assert weights.shape == prices.shape, "Shapes do not match"
    B, N = weights.shape
    assert B >= 3, "SharpLoss needs at least 3 time steps (>= 2 returns)"

    tb = _pick_block_rows(B, N, block_rows)
    b_pad = _round_up(B, tb)
    if b_pad != B:
        pad = ((0, b_pad - B), (0, 0))
        weights = jnp.pad(weights, pad)
        prices = jnp.pad(prices, pad)
    num_tiles = b_pad // tb

    kernel = functools.partial(_sharp_loss_kernel, batch=B)

    out = pl.pallas_call(
        kernel,
        out_shape=jax.ShapeDtypeStruct((1, 1), jnp.float32),
        grid=(num_tiles,),
        in_specs=[
            pl.BlockSpec((tb, N), lambda g: (g, 0)),
            pl.BlockSpec((tb, N), lambda g: (g, 0)),
        ],
        out_specs=pl.BlockSpec((1, 1), lambda g: (0, 0)),
        scratch_shapes=[
            pltpu.VMEM((1, 1), jnp.float32),   # carried last portfolio value
            pltpu.VMEM((1, 1), jnp.float32),   # running sum log(1 + r)
            pltpu.VMEM((1, 1), jnp.float32),   # running sum r
            pltpu.VMEM((1, 1), jnp.float32),   # running sum r^2
        ],
        compiler_params=pltpu.CompilerParams(
            dimension_semantics=("arbitrary",)),
    )(weights, prices)
    return out[0, 0]


def sharp_loss_reference(weights, prices):
    """Pure-JAX reference mirroring the PyTorch forward (torch.std is ddof=1)."""
    v = jnp.sum(weights.astype(jnp.float32) * prices.astype(jnp.float32), axis=-1)
    returns = v[1:] / (v[:-1] + 1e-7) - 1.0
    n = returns.shape[0]
    ann_mean = jnp.prod(1.0 + returns) ** (252.0 / n) - 1.0
    ann_std = jnp.sqrt(jnp.sum((returns - jnp.mean(returns)) ** 2) / (n - 1)) * (252.0 ** 0.5)
    return -(ann_mean / ann_std)


if __name__ == "__main__":
    key = jax.random.PRNGKey(0)
    k_w, k_p, k_w2, k_p2 = jax.random.split(key, 4)

    # Case 1: small single-tile problem (B=8 time steps, 32 assets).
    # Positive weights/prices keep the cumulative growth positive (a fractional
    # power of a negative base is NaN in torch as well).
    B, N = 8, 32
    w = jax.random.uniform(k_w, (B, N), jnp.float32, minval=0.0, maxval=1.0)
    w = w / jnp.sum(w, axis=-1, keepdims=True)
    p = jax.random.uniform(k_p, (B, N), jnp.float32, minval=0.5, maxval=1.5)

    out = sharp_loss(w, p)
    jax.block_until_ready(out)
    ref = sharp_loss_reference(w, p)
    assert jnp.allclose(out, ref, rtol=1e-4, atol=1e-4), (out, ref)

    # Case 2: multi-tile path exercising the cross-tile carry and the padding
    # mask (B=44 rows, block_rows=16 -> 3 tiles, last tile padded to 48).
    B2, N2 = 44, 32
    w2 = jax.random.uniform(k_w2, (B2, N2), jnp.float32, minval=0.0, maxval=1.0)
    w2 = w2 / jnp.sum(w2, axis=-1, keepdims=True)
    p2 = jax.random.uniform(k_p2, (B2, N2), jnp.float32, minval=0.5, maxval=1.5)

    out2 = sharp_loss(w2, p2, block_rows=16)
    jax.block_until_ready(out2)
    ref2 = sharp_loss_reference(w2, p2)
    assert jnp.allclose(out2, ref2, rtol=1e-4, atol=1e-4), (out2, ref2)

    print("KERNEL_OK")
</pallas_src>

<mosaic_0001>
module attributes {stable_mosaic.version = 11 : i64} {
  func.func @_sharp_loss_kernel(%arg0: i32, %arg1: memref<8x32xf32, #tpu.memory_space<vmem>>, %arg2: memref<8x32xf32, #tpu.memory_space<vmem>>, %arg3: memref<1x1xf32, #tpu.memory_space<vmem>>, %arg4: memref<1x1xf32, #tpu.memory_space<vmem>>, %arg5: memref<1x1xf32, #tpu.memory_space<vmem>>, %arg6: memref<1x1xf32, #tpu.memory_space<vmem>>, %arg7: memref<1x1xf32, #tpu.memory_space<vmem>>) attributes {dimension_semantics = [#tpu.dimension_semantics<arbitrary>], iteration_bounds = array<i64: 1>, scalar_prefetch = 0 : i64, scratch_operands = 4 : i64, tpu.core_type = #tpu.core_type<tc>, window_params = [{transform_indices = @transform_0, window_bounds = array<i64: 8, 32>}, {transform_indices = @transform_1, window_bounds = array<i64: 8, 32>}, {pipeline_mode = #tpu.pipeline_mode<synchronous>, transform_indices = @transform_2, window_bounds = array<i64: 1, 1>}]} {
    %c0_i32 = arith.constant 0 : i32
    %0 = arith.cmpi eq, %arg0, %c0_i32 : i32
    %1 = arith.extui %0 : i1 to i32
    %c0_i32_0 = arith.constant 0 : i32
    %2 = arith.cmpi ne, %1, %c0_i32_0 : i32
    scf.if %2 {
      %cst_32 = arith.constant 1.000000e+00 : f32
      %65 = vector.broadcast %cst_32 : f32 to vector<1x1xf32>
      %c0_33 = arith.constant 0 : index
      %c0_34 = arith.constant 0 : index
      %66 = vector.load %arg4[%c0_33, %c0_34] : memref<1x1xf32, #tpu.memory_space<vmem>>, vector<1x1xf32>
      tpu.vector_store %arg4[%c0_33, %c0_34], %65 {strides = array<i32>} : memref<1x1xf32, #tpu.memory_space<vmem>>, vector<1x1xf32>,
      %cst_35 = arith.constant 0.000000e+00 : f32
      %67 = vector.broadcast %cst_35 : f32 to vector<1x1xf32>
      %c0_36 = arith.constant 0 : index
      %c0_37 = arith.constant 0 : index
      %68 = vector.load %arg5[%c0_36, %c0_37] : memref<1x1xf32, #tpu.memory_space<vmem>>, vector<1x1xf32>
      tpu.vector_store %arg5[%c0_36, %c0_37], %67 {strides = array<i32>} : memref<1x1xf32, #tpu.memory_space<vmem>>, vector<1x1xf32>,
      %cst_38 = arith.constant 0.000000e+00 : f32
      %69 = vector.broadcast %cst_38 : f32 to vector<1x1xf32>
      %c0_39 = arith.constant 0 : index
      %c0_40 = arith.constant 0 : index
      %70 = vector.load %arg6[%c0_39, %c0_40] : memref<1x1xf32, #tpu.memory_space<vmem>>, vector<1x1xf32>
      tpu.vector_store %arg6[%c0_39, %c0_40], %69 {strides = array<i32>} : memref<1x1xf32, #tpu.memory_space<vmem>>, vector<1x1xf32>,
      %cst_41 = arith.constant 0.000000e+00 : f32
      %71 = vector.broadcast %cst_41 : f32 to vector<1x1xf32>
      %c0_42 = arith.constant 0 : index
      %c0_43 = arith.constant 0 : index
      %72 = vector.load %arg7[%c0_42, %c0_43] : memref<1x1xf32, #tpu.memory_space<vmem>>, vector<1x1xf32>
      tpu.vector_store %arg7[%c0_42, %c0_43], %71 {strides = array<i32>} : memref<1x1xf32, #tpu.memory_space<vmem>>, vector<1x1xf32>,
    } else {
    }
    %c0 = arith.constant 0 : index
    %c0_1 = arith.constant 0 : index
    %3 = vector.load %arg1[%c0, %c0_1] : memref<8x32xf32, #tpu.memory_space<vmem>>, vector<8x32xf32>
    %c0_2 = arith.constant 0 : index
    %c0_3 = arith.constant 0 : index
    %4 = vector.load %arg2[%c0_2, %c0_3] : memref<8x32xf32, #tpu.memory_space<vmem>>, vector<8x32xf32>
    %5 = arith.mulf %3, %4 : vector<8x32xf32>
    %cst = arith.constant dense<0.000000e+00> : vector<8xf32>
    %6 = vector.multi_reduction <add>, %5, %cst [1] : vector<8x32xf32> to vector<8xf32>
    %7 = vector.shape_cast %6 : vector<8xf32> to vector<8x1xf32>
    %8 = tpu.iota {dimensions = array<i32: 0>} : vector<8x1xi32>
    %c1_i32 = arith.constant 1 : i32
    %9 = tpu.dynamic_rotate %7 by %c1_i32 dim 0 : vector<8x1xf32>, i32 -> vector<8x1xf32>
    %c0_i32_4 = arith.constant 0 : i32
    %10 = vector.broadcast %c0_i32_4 : i32 to vector<8x1xi32>
    %11 = arith.cmpi eq, %8, %10 : vector<8x1xi32>
    %c0_5 = arith.constant 0 : index
    %c0_6 = arith.constant 0 : index
    %12 = vector.load %arg4[%c0_5, %c0_6] : memref<1x1xf32, #tpu.memory_space<vmem>>, vector<1x1xf32>
    %13 = vector.shape_cast %12 : vector<1x1xf32> to vector<1x1xf32>
    %14 = vector.broadcast %13 : vector<1x1xf32> to vector<8x1xf32>
    %15 = arith.select %11, %14, %9 : vector<8x1xi1>, vector<8x1xf32>
    %cst_7 = arith.constant 1.000000e-07 : f32
    %16 = vector.broadcast %cst_7 : f32 to vector<8x1xf32>
    %17 = arith.addf %15, %16 : vector<8x1xf32>
    %18 = arith.divf %7, %17 : vector<8x1xf32>
    %cst_8 = arith.constant 1.000000e+00 : f32
    %19 = vector.broadcast %cst_8 : f32 to vector<8x1xf32>
    %20 = arith.subf %18, %19 : vector<8x1xf32>
    %c8_i32 = arith.constant 8 : i32
    %21 = arith.muli %arg0, %c8_i32 : i32
    %22 = vector.broadcast %21 : i32 to vector<8x1xi32>
    %23 = arith.addi %22, %8 : vector<8x1xi32>
    %c1_i32_9 = arith.constant 1 : i32
    %24 = vector.broadcast %c1_i32_9 : i32 to vector<8x1xi32>
    %25 = arith.cmpi sge, %23, %24 : vector<8x1xi32>
    %c8_i32_10 = arith.constant 8 : i32
    %26 = vector.broadcast %c8_i32_10 : i32 to vector<8x1xi32>
    %27 = arith.cmpi slt, %23, %26 : vector<8x1xi32>
    %28 = arith.andi %25, %27 : vector<8x1xi1>
    %cst_11 = arith.constant 0.000000e+00 : f32
    %29 = vector.broadcast %cst_11 : f32 to vector<8x1xf32>
    %30 = arith.select %28, %20, %29 : vector<8x1xi1>, vector<8x1xf32>
    %cst_12 = arith.constant 1.000000e+00 : f32
    %31 = vector.broadcast %cst_12 : f32 to vector<8x1xf32>
    %32 = arith.addf %31, %20 : vector<8x1xf32>
    %33 = math.log %32 : vector<8x1xf32>
    %34 = arith.select %28, %33, %29 : vector<8x1xi1>, vector<8x1xf32>
    %c0_13 = arith.constant 0 : index
    %c0_14 = arith.constant 0 : index
    %35 = vector.load %arg5[%c0_13, %c0_14] : memref<1x1xf32, #tpu.memory_space<vmem>>, vector<1x1xf32>
    %36 = vector.shape_cast %34 : vector<8x1xf32> to vector<1x8x1xf32>
    %cst_15 = arith.constant dense<0.000000e+00> : vector<1xf32>
    %37 = vector.multi_reduction <add>, %36, %cst_15 [1, 2] : vector<1x8x1xf32> to vector<1xf32>
    %38 = vector.shape_cast %37 : vector<1xf32> to vector<1x1x1xf32>
    %39 = vector.extract %38[0, 0, 0] : f32 from vector<1x1x1xf32>
    %40 = vector.broadcast %39 : f32 to vector<1x1xf32>
    %41 = arith.addf %35, %40 : vector<1x1xf32>
    %c0_16 = arith.constant 0 : index
    %c0_17 = arith.constant 0 : index
    %42 = vector.load %arg5[%c0_16, %c0_17] : memref<1x1xf32, #tpu.memory_space<vmem>>, vector<1x1xf32>
    tpu.vector_store %arg5[%c0_16, %c0_17], %41 {strides = array<i32>} : memref<1x1xf32, #tpu.memory_space<vmem>>, vector<1x1xf32>,
    %c0_18 = arith.constant 0 : index
    %c0_19 = arith.constant 0 : index
    %43 = vector.load %arg6[%c0_18, %c0_19] : memref<1x1xf32, #tpu.memory_space<vmem>>, vector<1x1xf32>
    %44 = vector.shape_cast %30 : vector<8x1xf32> to vector<1x8x1xf32>
    %cst_20 = arith.constant dense<0.000000e+00> : vector<1xf32>
    %45 = vector.multi_reduction <add>, %44, %cst_20 [1, 2] : vector<1x8x1xf32> to vector<1xf32>
    %46 = vector.shape_cast %45 : vector<1xf32> to vector<1x1x1xf32>
    %47 = vector.extract %46[0, 0, 0] : f32 from vector<1x1x1xf32>
    %48 = vector.broadcast %47 : f32 to vector<1x1xf32>
    %49 = arith.addf %43, %48 : vector<1x1xf32>
    %c0_21 = arith.constant 0 : index
    %c0_22 = arith.constant 0 : index
    %50 = vector.load %arg6[%c0_21, %c0_22] : memref<1x1xf32, #tpu.memory_space<vmem>>, vector<1x1xf32>
    tpu.vector_store %arg6[%c0_21, %c0_22], %49 {strides = array<i32>} : memref<1x1xf32, #tpu.memory_space<vmem>>, vector<1x1xf32>,
    %c0_23 = arith.constant 0 : index
    %c0_24 = arith.constant 0 : index
    %51 = vector.load %arg7[%c0_23, %c0_24] : memref<1x1xf32, #tpu.memory_space<vmem>>, vector<1x1xf32>
    %52 = arith.mulf %30, %30 : vector<8x1xf32>
    %53 = vector.shape_cast %52 : vector<8x1xf32> to vector<1x8x1xf32>
    %cst_25 = arith.constant dense<0.000000e+00> : vector<1xf32>
    %54 = vector.multi_reduction <add>, %53, %cst_25 [1, 2] : vector<1x8x1xf32> to vector<1xf32>
    %55 = vector.shape_cast %54 : vector<1xf32> to vector<1x1x1xf32>
    %56 = vector.extract %55[0, 0, 0] : f32 from vector<1x1x1xf32>
    %57 = vector.broadcast %56 : f32 to vector<1x1xf32>
    %58 = arith.addf %51, %57 : vector<1x1xf32>
    %c0_26 = arith.constant 0 : index
    %c0_27 = arith.constant 0 : index
    %59 = vector.load %arg7[%c0_26, %c0_27] : memref<1x1xf32, #tpu.memory_space<vmem>>, vector<1x1xf32>
    tpu.vector_store %arg7[%c0_26, %c0_27], %58 {strides = array<i32>} : memref<1x1xf32, #tpu.memory_space<vmem>>, vector<1x1xf32>,
    %60 = vector.extract_strided_slice %7 {offsets = [7, 0], sizes = [1, 1], strides = [1, 1]} : vector<8x1xf32> to vector<1x1xf32>
    %c0_28 = arith.constant 0 : index
    %c0_29 = arith.constant 0 : index
    %61 = vector.load %arg4[%c0_28, %c0_29] : memref<1x1xf32, #tpu.memory_space<vmem>>, vector<1x1xf32>
    tpu.vector_store %arg4[%c0_28, %c0_29], %60 {strides = array<i32>} : memref<1x1xf32, #tpu.memory_space<vmem>>, vector<1x1xf32>,
    %c0_i32_30 = arith.constant 0 : i32
    %62 = arith.cmpi eq, %arg0, %c0_i32_30 : i32
    %63 = arith.extui %62 : i1 to i32
    %c0_i32_31 = arith.constant 0 : i32
    %64 = arith.cmpi ne, %63, %c0_i32_31 : i32
    scf.if %64 {
      %c0_32 = arith.constant 0 : index
      %c0_33 = arith.constant 0 : index
      %65 = vector.load %arg5[%c0_32, %c0_33] : memref<1x1xf32, #tpu.memory_space<vmem>>, vector<1x1xf32>
      %cst_34 = arith.constant 3.600000e+01 : f32
      %66 = vector.broadcast %cst_34 : f32 to vector<1x1xf32>
      %67 = arith.mulf %66, %65 : vector<1x1xf32>
      %68 = math.exp %67 : vector<1x1xf32>
      %cst_35 = arith.constant 1.000000e+00 : f32
      %69 = vector.broadcast %cst_35 : f32 to vector<1x1xf32>
      %70 = arith.subf %68, %69 : vector<1x1xf32>
      %c0_36 = arith.constant 0 : index
      %c0_37 = arith.constant 0 : index
      %71 = vector.load %arg7[%c0_36, %c0_37] : memref<1x1xf32, #tpu.memory_space<vmem>>, vector<1x1xf32>
      %c0_38 = arith.constant 0 : index
      %c0_39 = arith.constant 0 : index
      %72 = vector.load %arg6[%c0_38, %c0_39] : memref<1x1xf32, #tpu.memory_space<vmem>>, vector<1x1xf32>
      %c0_40 = arith.constant 0 : index
      %c0_41 = arith.constant 0 : index
      %73 = vector.load %arg6[%c0_40, %c0_41] : memref<1x1xf32, #tpu.memory_space<vmem>>, vector<1x1xf32>
      %74 = arith.mulf %72, %73 : vector<1x1xf32>
      %cst_42 = arith.constant 7.000000e+00 : f32
      %75 = vector.broadcast %cst_42 : f32 to vector<1x1xf32>
      %76 = arith.divf %74, %75 : vector<1x1xf32>
      %77 = arith.subf %71, %76 : vector<1x1xf32>
      %cst_43 = arith.constant 6.000000e+00 : f32
      %78 = vector.broadcast %cst_43 : f32 to vector<1x1xf32>
      %79 = arith.divf %77, %78 : vector<1x1xf32>
      %cst_44 = arith.constant 0.000000e+00 : f32
      %80 = vector.broadcast %cst_44 : f32 to vector<1x1xf32>
      %81 = arith.maximumf %79, %80 : vector<1x1xf32>
      %82 = math.sqrt %81 : vector<1x1xf32>
      %cst_45 = arith.constant 15.8745079 : f32
      %83 = vector.broadcast %cst_45 : f32 to vector<1x1xf32>
      %84 = arith.mulf %82, %83 : vector<1x1xf32>
      %85 = arith.divf %70, %84 : vector<1x1xf32>
      %cst_46 = arith.constant 0.000000e+00 : f32
      %86 = vector.broadcast %cst_46 : f32 to vector<1x1xf32>
      %87 = arith.subf %86, %85 : vector<1x1xf32>
      %c0_47 = arith.constant 0 : index
      %c0_48 = arith.constant 0 : index
      %88 = vector.load %arg3[%c0_47, %c0_48] : memref<1x1xf32, #tpu.memory_space<vmem>>, vector<1x1xf32>
      tpu.vector_store %arg3[%c0_47, %c0_48], %87 {strides = array<i32>} : memref<1x1xf32, #tpu.memory_space<vmem>>, vector<1x1xf32>,
    } else {
    }
    return
  }
  func.func @transform_0(%arg0: i32) -> (i32, i32) {
    %c0_i32 = arith.constant 0 : i32
    %c0_i32_0 = arith.constant 0 : i32
    return %arg0, %c0_i32 : i32, i32
  }
  func.func @transform_1(%arg0: i32) -> (i32, i32) {
    %c0_i32 = arith.constant 0 : i32
    %c0_i32_0 = arith.constant 0 : i32
    return %arg0, %c0_i32 : i32, i32
  }
  func.func @transform_2(%arg0: i32) -> (i32, i32) {
    %c0_i32 = arith.constant 0 : i32
    %c0_i32_0 = arith.constant 0 : i32
    %c0_i32_1 = arith.constant 0 : i32
    return %c0_i32, %c0_i32_0 : i32, i32
  }
}

</mosaic_0001>

<llo_original>
// kernel: tpu_custom_call.1
$region0: #{tpu_custom_call.1}
  #allocation0 [shape = 'u32[]', space=smem, size = 0x4, offset = 0x4, fixed_abs, tag = 'smem constant byte address 0x4 - core index']
  #allocation1 [shape = 'u32[144,128]{1,0:T(1,128)}', space=vmem, size = 0x12000, scoped, tag = 'internal scratch']
  #allocation2 [shape = 'f32[1,1]{1,0:T(1,128)}', space=vmem, size = 0x200, scoped, tag = 'scratch operand']
  #allocation3 [shape = 'f32[1,1]{1,0:T(1,128)}', space=vmem, size = 0x200, scoped, tag = 'scratch operand']
  #allocation4 [shape = 'f32[1,1]{1,0:T(1,128)}', space=vmem, size = 0x200, scoped, tag = 'scratch operand']
  #allocation5 [shape = 'f32[1,1]{1,0:T(1,128)}', space=vmem, size = 0x200, scoped, tag = 'scratch operand']
  %s0 = inlined_call_operand.hbm [shape: f32[8,32], index: 0, kind: input, shape index: {}]
  %s1 = inlined_call_operand.hbm [shape: f32[8,32], index: 1, kind: input, shape index: {}]
  %s2 = inlined_call_operand.hbm [shape: f32[1,1], index: 2, kind: output, shape index: {}]
  %s3 = sld [smem:[#allocation0]]
  $region34: #{tpu_custom_call.1} parent=0
    _
  %s5 = ssub.s32 1, %s3
  %s6 = scalar_select 0, %s5, %s3
  $region1: #{tpu_custom_call.1} parent=0
    #allocation6 [shape = 'u8[4096]{0}', space=vmem, size = 0x1000, scoped, tag = 'input window, operand 0, single buffered']
    #allocation7 [shape = 's32[1]{0}', space=sflag, size = 0x4, scoped, tag = 'scoped memory for tpu_custom_call.1']
    #allocation8 [shape = 's32[1]{0}', space=sflag, size = 0x4, scoped, tag = 'scoped memory for tpu_custom_call.1']
    #allocation9 [shape = 'u8[4096]{0}', space=vmem, size = 0x1000, scoped, tag = 'input window, operand 1, single buffered']
    #allocation10 [shape = 's32[1]{0}', space=sflag, size = 0x4, scoped, tag = 'scoped memory for tpu_custom_call.1']
    #allocation11 [shape = 'u8[512]{0}', space=vmem, size = 0x400, scoped, tag = 'output window, operand 0, single buffered']
    %7 = vsyncpa [#allocation7], 0
    %8 = vsyncpa [#allocation10], 0
    %9 = vsyncpa [#allocation8], 0
    // Predicated region
    $region2: #{tpu_custom_call.1} parent=1 // pred_check
      _
    $region3: #{tpu_custom_call.1} parent=1 // pred_check_branch
      %11 = sbr.rel (0) target = $region5
    $region4: #{tpu_custom_call.1} parent=1 // pred_region
      %s13 = ssub.s32 128, 128
      %14 = vsyncadd [#allocation7], %s13
      %s16 = sshll.u32 [#allocation6], 4
      %s17 = int_to_ptr.vmem [resolvable:$true] %s16
      %19 = dma.hbm_to_vmem [thread:$0]  %s0, 128, %s17, [#allocation7]
    $region5: #{tpu_custom_call.1} parent=1 // pred_fallthru
      _
    // Predicated region
    $region6: #{tpu_custom_call.1} parent=1 // pred_check
      _
    $region7: #{tpu_custom_call.1} parent=1 // pred_check_branch
      %21 = sbr.rel (0) target = $region9
    $region8: #{tpu_custom_call.1} parent=1 // pred_region
      %s23 = ssub.s32 128, 128
      %24 = vsyncadd [#allocation10], %s23
      %s26 = sshll.u32 [#allocation9], 4
      %s27 = int_to_ptr.vmem [resolvable:$true] %s26
      %29 = dma.hbm_to_vmem [thread:$0]  %s1, 128, %s27, [#allocation10]
    $region9: #{tpu_custom_call.1} parent=1 // pred_fallthru
      _
    // Predicated region
    $region10: #{tpu_custom_call.1} parent=1 // pred_check
      _
    $region11: #{tpu_custom_call.1} parent=1 // pred_check_branch
      %31 = sbr.rel (0) target = $region13
    $region12: #{tpu_custom_call.1} parent=1 // pred_region
      %32 = dma.done [#allocation7], 128
    $region13: #{tpu_custom_call.1} parent=1 // pred_fallthru
      _
    // Predicated region
    $region14: #{tpu_custom_call.1} parent=1 // pred_check
      _
    $region15: #{tpu_custom_call.1} parent=1 // pred_check_branch
      %34 = sbr.rel (0) target = $region17
    $region16: #{tpu_custom_call.1} parent=1 // pred_region
      %35 = dma.done [#allocation10], 128
    $region17: #{tpu_custom_call.1} parent=1 // pred_fallthru
      _
    %p36 = scmp.eq.s32.totalorder 0, 0
    // Predicated region
    $region18: #{tpu_custom_call.1} parent=1 // pred_check
      %p37 = pneg %p36
    $region19: #{tpu_custom_call.1} parent=1 // pred_check_branch
      %39 = sbr.rel (%p37) target = $region21
    $region20: #{tpu_custom_call.1} parent=1 // pred_region
      %vm40 = vcmask 0
      %41 = vst.msk [vmem:[#allocation2] sm:$0x1] %vm40, 1.0
      %42 = vst.msk [vmem:[#allocation3] sm:$0x1] %vm40, 0.0
      %43 = vst.msk [vmem:[#allocation4] sm:$0x1] %vm40, 0.0
      %44 = vst.msk [vmem:[#allocation5] sm:$0x1] %vm40, 0.0
    $region21: #{tpu_custom_call.1} parent=1 // pred_fallthru
      _
    %v45 = vld [vmem:[#allocation6] sm:$0xff]
    %v46 = vld [vmem:[#allocation9] sm:$0xff]
    %v47 = vmul.f32 %v45, %v46
    %vm48 = vcmask 261120
    %v49 = vsel %vm48, %v47, 0.0
    %50 = vadd.xlane.f32.xlu0 %v49
    %v51 = vpop.xlane.xlu0 %50
    %v52 = vlaneseq
    %v53 = vshrl.u32 %v52, 7
    %v54 = vrot.slane %v51, 7
    %vm55 = vcmp.eq.s32.totalorder %v53, 0
    %v56 = vld [vmem:[#allocation2] sm:$0x1]
    %v58 = vlaneseq
    %v59 = vshrl.u32 %v58, 7
    %v60 = vsub.s32 0, %v59
    %v61 = vrot.slane %v56, %v60
    %v63 = vsel %vm55, %v61, %v54
    %v64 = vadd.f32 %v63, 1e-07
    %v65 = vrcp.pop %v64
    %v66 = vmul.f32 %v51, %v65
    %v67 = vsub.f32 %v66, 1.0
    %s68 = smul.u32 0, 8
    %v69 = vstv %s68
    %v70 = vadd.s32 %v69, %v53
    %vm71 = vcmp.ge.s32.totalorder %v70, 1
    %vm72 = vcmp.lt.s32.totalorder %v70, 8
    %vm73 = vmand %vm71, %vm72
    %v74 = vsel %vm73, %v67, 0.0
    %v75 = vadd.f32 %v67, 1.0
    %v76 = vlog2.pop %v75
    %v77 = vmul.f32 %v76, 0.6931472
    %v78 = vsel %vm73, %v77, 0.0
    %v79 = vld [vmem:[#allocation3] sm:$0x1]
    %vm80 = vcmask 7168
    %v81 = vsel %vm80, %v78, 0.0
    %82 = vadd.xlane.f32.xlu0 %v81
    %v83 = vpop.xlane.xlu0 %82
    %v84 = vrot.slane %v83, 4
    %v85 = vadd.f32 %v83, %v84
    %v86 = vrot.slane %v85, 2
    %v87 = vadd.f32 %v85, %v86
    %v88 = vrot.slane %v87, 1
    %v89 = vadd.f32 %v87, %v88
    %s90 = vtos %v89
    %v91 = vstv %s90
    %v92 = vadd.f32 %v79, %v91
    %vm93 = vcmask 0
    %94 = vst.msk [vmem:[#allocation3] sm:$0x1] %vm93, %v92
    %v95 = vld [vmem:[#allocation4] sm:$0x1]
    %v96 = vsel %vm80, %v74, 0.0
    %97 = vadd.xlane.f32.xlu0 %v96
    %v98 = vpop.xlane.xlu0 %97
    %v99 = vrot.slane %v98, 4
    %v100 = vadd.f32 %v98, %v99
    %v101 = vrot.slane %v100, 2
    %v102 = vadd.f32 %v100, %v101
    %v103 = vrot.slane %v102, 1
    %v104 = vadd.f32 %v102, %v103
    %s105 = vtos %v104
    %v106 = vstv %s105
    %v107 = vadd.f32 %v95, %v106
    %108 = vst.msk [vmem:[#allocation4] sm:$0x1] %vm93, %v107
    %v109 = vld [vmem:[#allocation5] sm:$0x1]
    %v110 = vmul.f32 %v74, %v74
    %v111 = vsel %vm80, %v110, 0.0
    %112 = vadd.xlane.f32.xlu0 %v111
    %v113 = vpop.xlane.xlu0 %112
    %v114 = vrot.slane %v113, 4
    %v115 = vadd.f32 %v113, %v114
    %v116 = vrot.slane %v115, 2
    %v117 = vadd.f32 %v115, %v116
    %v118 = vrot.slane %v117, 1
    %v119 = vadd.f32 %v117, %v118
    %s120 = vtos %v119
    %v121 = vstv %s120
    %v122 = vadd.f32 %v109, %v121
    %123 = vst.msk [vmem:[#allocation5] sm:$0x1] %vm93, %v122
    %vm124 = vcmask 7175
    %125 = vst.msk [vmem:[#allocation2 - $0x7] sm:$0x80] %vm124, %v51
    // Predicated region
    $region22: #{tpu_custom_call.1} parent=1 // pred_check
      %p126 = pneg %p36
    $region23: #{tpu_custom_call.1} parent=1 // pred_check_branch
      %128 = sbr.rel (%p126) target = $region25
    $region24: #{tpu_custom_call.1} parent=1 // pred_region
      %v129 = vld [vmem:[#allocation3] sm:$0x1]
      %v130 = vmul.f32 %v129, 36.0
      %v131 = vmul.f32 %v130, 1.442695
      %v132 = vpow.pop %v131
      %v133 = vsub.f32 %v132, 1.0
      %v134 = vld [vmem:[#allocation5] sm:$0x1]
      %v135 = vld [vmem:[#allocation4] sm:$0x1]
      %v136 = vmul.f32 %v135, %v135
      %v137 = vrcp.pop 7.0
      %v138 = vmul.f32 %v136, %v137
      %v139 = vsub.f32 %v134, %v138
      %v140 = vrcp.pop 6.0
      %v141 = vmul.f32 %v139, %v140
      %v142 = vmax.f32 %v141, 0.0
      %v143 = vrsqrt.pop %v142
      %v144 = vmul.f32 %v142, %v143
      %vm145 = vcmp.eq.f32.partialorder %v142, inf
      %v146 = vsel %vm145, %v142, %v144
      %vm147 = vcmp.eq.f32.partialorder %v142, 0.0
      %v148 = vand.u32 %v142, 2147483648
      %v149 = vsel %vm147, %v148, %v146
      %v150 = vmul.f32 %v149, 15.874508
      %v151 = vrcp.pop %v150
      %v152 = vmul.f32 %v133, %v151
      %v153 = vsub.f32 0.0, %v152
      %154 = vst.msk [vmem:[#allocation11] sm:$0x1] %vm93, %v153
    $region25: #{tpu_custom_call.1} parent=1 // pred_fallthru
      _
    // Predicated region
    $region26: #{tpu_custom_call.1} parent=1 // pred_check
      _
    $region27: #{tpu_custom_call.1} parent=1 // pred_check_branch
      %156 = sbr.rel (0) target = $region29
    $region28: #{tpu_custom_call.1} parent=1 // pred_region
      %s158 = ssub.s32 16, 16
      %159 = vsyncadd [#allocation8], %s158
      %s161 = sshll.u32 [#allocation11], 4
      %s162 = int_to_ptr.vmem [resolvable:$true] %s161
      %164 = dma.vmem_to_hbm [thread:$0]  %s162, 16, %s2, [#allocation8]
    $region29: #{tpu_custom_call.1} parent=1 // pred_fallthru
      _
    // Predicated region
    $region30: #{tpu_custom_call.1} parent=1 // pred_check
      _
    $region31: #{tpu_custom_call.1} parent=1 // pred_check_branch
      %166 = sbr.rel (0) target = $region33
    $region32: #{tpu_custom_call.1} parent=1 // pred_region
      %167 = dma.done [#allocation8], 16
    $region33: #{tpu_custom_call.1} parent=1 // pred_fallthru
      _
    %168 = vsyncpa [#allocation7], 1
    %169 = vsyncpa [#allocation10], 1
    %170 = vsyncpa [#allocation8], 1

</llo_original>
